<compile_context>
chip_gen: v7x
topology: tpu7x:2x2x1
jax: 0.10.0
libtpu: 0.0.40
codegen_flags: <defaults>
</compile_context>

<pallas_src>
import jax
import jax.numpy as jnp
from jax.experimental import pallas as pl
from jax.experimental.pallas import tpu as pltpu


def _round_up(x, m):
    return ((x + m - 1) // m) * m


def _mse_onehot_lane_dense_kernel(x_ref, m_ref, o_ref):
    # x_ref: (TS, 128) float, m_ref: (TS, 128) int8 one-hot mask, o_ref: like x.
    x = x_ref[...]
    d = x - m_ref[...].astype(x.dtype)
    o_ref[...] = d * d


def mse_loss_on_simplex(state_output, y, *, num_class=10, on_simplex=True,
                        max_block_rows=8192):
    """Pallas equivalent of MSELoss.forward (reduction='none')."""
    assert on_simplex, "States need to be on simplex"
    assert state_output.ndim == 2 and state_output.shape[1] == num_class
    assert jnp.issubdtype(state_output.dtype, jnp.floating)
    assert max_block_rows % 32 == 0
    B, C = state_output.shape

    # Lane-dense int8 one-hot mask, built once in the wrapper (cheap XLA op).
    cls = jnp.arange(C, dtype=jnp.int32)
    mask = (y.astype(jnp.int32)[:, None] == cls[None, :]).astype(jnp.int8)

    LANES = 128
    total = B * C
    rows = pl.cdiv(total, LANES)

    # Block rows: multiple of 32 (legal sublane tiling for f32/bf16/int8),
    # capped so the double-buffered footprint stays well under v7x's 32 MiB
    # scoped VMEM default.
    ts = min(max_block_rows, _round_up(max(rows, 1), 32))
    grid_m = pl.cdiv(rows, ts)
    padded_rows = grid_m * ts
    padded_total = padded_rows * LANES

    # Row-major flatten is layout-preserving and free.
    x_flat = state_output.reshape(total)
    m_flat = mask.reshape(total)
    if padded_total != total:
        # Zero pad => padded outputs are exactly 0 and get sliced off below.
        x_flat = jnp.pad(x_flat, (0, padded_total - total))
        m_flat = jnp.pad(m_flat, (0, padded_total - total))
    x2d = x_flat.reshape(padded_rows, LANES)
    m2d = m_flat.reshape(padded_rows, LANES)

    # VMEM budget: (x f32 + mask i8 + out f32) per block, double-buffered,
    # + fixed headroom. Worst case (ts=8192) ~23 MiB.
    itemsize = jnp.dtype(state_output.dtype).itemsize
    per_step_bytes = ts * LANES * (itemsize + 1 + itemsize)
    vmem_bytes = 2 * per_step_bytes + (4 << 20)

    out2d = pl.pallas_call(
        _mse_onehot_lane_dense_kernel,
        out_shape=jax.ShapeDtypeStruct((padded_rows, LANES), state_output.dtype),
        grid_spec=pl.GridSpec(
            grid=(grid_m,),
            in_specs=[
                pl.BlockSpec((ts, LANES), lambda i: (i, 0)),
                pl.BlockSpec((ts, LANES), lambda i: (i, 0)),
            ],
            out_specs=pl.BlockSpec((ts, LANES), lambda i: (i, 0)),
        ),
        compiler_params=pltpu.CompilerParams(
            dimension_semantics=(pltpu.PARALLEL,),
            vmem_limit_bytes=int(vmem_bytes),
        ),
    )(x2d, m2d)

    out_flat = out2d.reshape(padded_total)
    if padded_total != total:
        out_flat = out_flat[:total]
    return out_flat.reshape(B, C)


if __name__ == "__main__":
    key = jax.random.PRNGKey(0)
    k1, k2, k3, k4 = jax.random.split(key, 4)

    NUM_CLASS = 10

    # Case 1: small batch.
    B1 = 8
    logits1 = jax.random.normal(k1, (B1, NUM_CLASS), dtype=jnp.float32)
    so1 = jax.nn.softmax(logits1, axis=-1)
    y1 = jax.random.randint(k2, (B1,), 0, NUM_CLASS, dtype=jnp.int32)
    out1 = jax.block_until_ready(mse_loss_on_simplex(so1, y1, num_class=NUM_CLASS))
    ref1 = (so1 - jax.nn.one_hot(y1, NUM_CLASS, dtype=jnp.float32)) ** 2
    assert out1.shape == (B1, NUM_CLASS)
    assert jnp.allclose(out1, ref1, atol=1e-6), "mismatch vs reference (case 1)"

    # Case 2: ragged batch (exercises the pad-to-block path).
    B2 = 37
    logits2 = jax.random.normal(k3, (B2, NUM_CLASS), dtype=jnp.float32)
    so2 = jax.nn.softmax(logits2, axis=-1)
    y2 = jax.random.randint(k4, (B2,), 0, NUM_CLASS, dtype=jnp.int32)
    out2 = jax.block_until_ready(mse_loss_on_simplex(so2, y2, num_class=NUM_CLASS))
    ref2 = (so2 - jax.nn.one_hot(y2, NUM_CLASS, dtype=jnp.float32)) ** 2
    assert out2.shape == (B2, NUM_CLASS)
    assert jnp.allclose(out2, ref2, atol=1e-6), "mismatch vs reference (case 2)"

    print("KERNEL_OK")
</pallas_src>

<mosaic_0001>
module attributes {stable_mosaic.version = 11 : i64} {
  func.func @_mse_onehot_lane_dense_kernel(%arg0: i32, %arg1: memref<32x128xf32, #tpu.memory_space<vmem>>, %arg2: memref<32x128xi8, #tpu.memory_space<vmem>>, %arg3: memref<32x128xf32, #tpu.memory_space<vmem>>) attributes {dimension_semantics = [#tpu.dimension_semantics<parallel>], iteration_bounds = array<i64: 1>, scalar_prefetch = 0 : i64, scratch_operands = 0 : i64, tpu.core_type = #tpu.core_type<tc>, window_params = [{transform_indices = @transform_0, window_bounds = array<i64: 32, 128>}, {transform_indices = @transform_1, window_bounds = array<i64: 32, 128>}, {transform_indices = @transform_2, window_bounds = array<i64: 32, 128>}]} {
    %c0 = arith.constant 0 : index
    %c0_0 = arith.constant 0 : index
    %0 = vector.load %arg1[%c0, %c0_0] : memref<32x128xf32, #tpu.memory_space<vmem>>, vector<32x128xf32>
    %c0_1 = arith.constant 0 : index
    %c0_2 = arith.constant 0 : index
    %1 = vector.load %arg2[%c0_1, %c0_2] : memref<32x128xi8, #tpu.memory_space<vmem>>, vector<32x128xi8>
    %2 = arith.sitofp %1 : vector<32x128xi8> to vector<32x128xf32>
    %3 = arith.subf %0, %2 : vector<32x128xf32>
    %4 = arith.mulf %3, %3 : vector<32x128xf32>
    %c0_3 = arith.constant 0 : index
    %c0_4 = arith.constant 0 : index
    %5 = vector.load %arg3[%c0_3, %c0_4] : memref<32x128xf32, #tpu.memory_space<vmem>>, vector<32x128xf32>
    tpu.vector_store %arg3[%c0_3, %c0_4], %4 {strides = array<i32>} : memref<32x128xf32, #tpu.memory_space<vmem>>, vector<32x128xf32>,
    return
  }
  func.func @transform_0(%arg0: i32) -> (i32, i32) {
    %c0_i32 = arith.constant 0 : i32
    %c0_i32_0 = arith.constant 0 : i32
    return %arg0, %c0_i32 : i32, i32
  }
  func.func @transform_1(%arg0: i32) -> (i32, i32) {
    %c0_i32 = arith.constant 0 : i32
    %c0_i32_0 = arith.constant 0 : i32
    return %arg0, %c0_i32 : i32, i32
  }
  func.func @transform_2(%arg0: i32) -> (i32, i32) {
    %c0_i32 = arith.constant 0 : i32
    %c0_i32_0 = arith.constant 0 : i32
    return %arg0, %c0_i32 : i32, i32
  }
}

</mosaic_0001>

<llo_original>
// kernel: tpu_custom_call.1
$region0: #{tpu_custom_call.1}
  #allocation0 [shape = 'u32[]', space=smem, size = 0x4, offset = 0x4, fixed_abs, tag = 'smem constant byte address 0x4 - core index']
  #allocation1 [shape = 'u32[144,128]{1,0:T(1,128)}', space=vmem, size = 0x12000, scoped, tag = 'internal scratch']
  %s0 = inlined_call_operand.hbm [shape: f32[32,128], index: 0, kind: input, shape index: {}]
  %s1 = inlined_call_operand.hbm [shape: s8[32,128], index: 1, kind: input, shape index: {}]
  %s2 = inlined_call_operand.hbm [shape: f32[32,128], index: 2, kind: output, shape index: {}]
  %s3 = sld [smem:[#allocation0]]
  $region26: #{tpu_custom_call.1} parent=0
    _
  %s5 = ssub.s32 1, %s3
  %s6 = scalar_select 0, %s5, %s3
  $region1: #{tpu_custom_call.1} parent=0
    #allocation2 [shape = 'u8[16384]{0}', space=vmem, size = 0x4000, scoped, tag = 'input window, operand 0, single buffered']
    #allocation3 [shape = 's32[1]{0}', space=sflag, size = 0x4, scoped, tag = 'scoped memory for tpu_custom_call.1']
    #allocation4 [shape = 's32[1]{0}', space=sflag, size = 0x4, scoped, tag = 'scoped memory for tpu_custom_call.1']
    #allocation5 [shape = 'u8[4096]{0}', space=vmem, size = 0x1000, scoped, tag = 'input window, operand 1, single buffered']
    #allocation6 [shape = 's32[1]{0}', space=sflag, size = 0x4, scoped, tag = 'scoped memory for tpu_custom_call.1']
    #allocation7 [shape = 'u8[16384]{0}', space=vmem, size = 0x4000, scoped, tag = 'output window, operand 0, single buffered']
    %7 = vsyncpa [#allocation3], 0
    %8 = vsyncpa [#allocation6], 0
    %9 = vsyncpa [#allocation4], 0
    // Predicated region
    $region2: #{tpu_custom_call.1} parent=1 // pred_check
      _
    $region3: #{tpu_custom_call.1} parent=1 // pred_check_branch
      %11 = sbr.rel (0) target = $region5
    $region4: #{tpu_custom_call.1} parent=1 // pred_region
      %s13 = ssub.s32 512, 512
      %14 = vsyncadd [#allocation3], %s13
      %s15 = sshll.u32 [#allocation2], 4
      %s16 = int_to_ptr.vmem [resolvable:$true] %s15
      %21 = dma.hbm_to_vmem [thread:$0]  %s0, 512, %s16, [#allocation3], 128, 128, 8
    $region5: #{tpu_custom_call.1} parent=1 // pred_fallthru
      _
    // Predicated region
    $region6: #{tpu_custom_call.1} parent=1 // pred_check
      _
    $region7: #{tpu_custom_call.1} parent=1 // pred_check_branch
      %23 = sbr.rel (0) target = $region9
    $region8: #{tpu_custom_call.1} parent=1 // pred_region
      %s25 = ssub.s32 128, 128
      %26 = vsyncadd [#allocation6], %s25
      %s28 = sshll.u32 [#allocation5], 4
      %s29 = int_to_ptr.vmem [resolvable:$true] %s28
      %31 = dma.hbm_to_vmem [thread:$0]  %s1, 128, %s29, [#allocation6]
    $region9: #{tpu_custom_call.1} parent=1 // pred_fallthru
      _
    // Predicated region
    $region10: #{tpu_custom_call.1} parent=1 // pred_check
      _
    $region11: #{tpu_custom_call.1} parent=1 // pred_check_branch
      %33 = sbr.rel (0) target = $region13
    $region12: #{tpu_custom_call.1} parent=1 // pred_region
      %34 = dma.done [#allocation3], 512
    $region13: #{tpu_custom_call.1} parent=1 // pred_fallthru
      _
    // Predicated region
    $region14: #{tpu_custom_call.1} parent=1 // pred_check
      _
    $region15: #{tpu_custom_call.1} parent=1 // pred_check_branch
      %36 = sbr.rel (0) target = $region17
    $region16: #{tpu_custom_call.1} parent=1 // pred_region
      %37 = dma.done [#allocation6], 128
    $region17: #{tpu_custom_call.1} parent=1 // pred_fallthru
      _
    %v38 = vld [vmem:[#allocation2] sm:$0xff]
    %v39 = vld [vmem:[#allocation2 + $0x8] sm:$0xff]
    %v40 = vld [vmem:[#allocation2 + $0x10] sm:$0xff]
    %v41 = vld [vmem:[#allocation2 + $0x18] sm:$0xff]
    %v42 = vld [vmem:[#allocation5] sm:$0xff]
    %v43 = vunpack.c.0.s8 %v42
    %v44 = vunpack.c.1.s8 %v42
    %v45 = vunpack.c.2.s8 %v42
    %v46 = vunpack.c.3.s8 %v42
    %v47 = vcvt.s32.f32 %v43
    %v48 = vcvt.s32.f32 %v44
    %v49 = vcvt.s32.f32 %v45
    %v50 = vcvt.s32.f32 %v46
    %v51 = vsub.f32 %v38, %v47
    %v52 = vsub.f32 %v39, %v48
    %v53 = vsub.f32 %v40, %v49
    %v54 = vsub.f32 %v41, %v50
    %v55 = vmul.f32 %v51, %v51
    %v56 = vmul.f32 %v52, %v52
    %v57 = vmul.f32 %v53, %v53
    %v58 = vmul.f32 %v54, %v54
    %59 = vst [vmem:[#allocation7] sm:$0xff] %v55
    %60 = vst [vmem:[#allocation7 + $0x8] sm:$0xff] %v56
    %61 = vst [vmem:[#allocation7 + $0x10] sm:$0xff] %v57
    %62 = vst [vmem:[#allocation7 + $0x18] sm:$0xff] %v58
    // Predicated region
    $region18: #{tpu_custom_call.1} parent=1 // pred_check
      _
    $region19: #{tpu_custom_call.1} parent=1 // pred_check_branch
      %64 = sbr.rel (0) target = $region21
    $region20: #{tpu_custom_call.1} parent=1 // pred_region
      %s66 = ssub.s32 512, 512
      %67 = vsyncadd [#allocation4], %s66
      %s68 = sshll.u32 [#allocation7], 4
      %s69 = int_to_ptr.vmem [resolvable:$true] %s68
      %74 = dma.vmem_to_hbm [thread:$0]  %s69, 512, %s2, [#allocation4], 128, 128, 8
    $region21: #{tpu_custom_call.1} parent=1 // pred_fallthru
      _
    // Predicated region
    $region22: #{tpu_custom_call.1} parent=1 // pred_check
      _
    $region23: #{tpu_custom_call.1} parent=1 // pred_check_branch
      %76 = sbr.rel (0) target = $region25
    $region24: #{tpu_custom_call.1} parent=1 // pred_region
      %77 = dma.done [#allocation4], 512
    $region25: #{tpu_custom_call.1} parent=1 // pred_fallthru
      _
    %78 = vsyncpa [#allocation3], 1
    %79 = vsyncpa [#allocation6], 1
    %80 = vsyncpa [#allocation4], 1

</llo_original>
